<compile_context>
chip_gen: v7x
topology: tpu7x:2x2x1
jax: 0.10.0
libtpu: 0.0.40
codegen_flags: <defaults>
</compile_context>

<pallas_src>
from functools import partial

import jax
import jax.numpy as jnp
from jax.experimental import pallas as pl
from jax.experimental.pallas import tpu as pltpu

_VMEM_LIMIT = 32 * 1024 * 1024        # safe on v5e/v6e/v7x
_FLAT_BLOCK_BUDGET = 8 * 1024 * 1024  # budget (bytes) for the flattened (L*C) lane axis
_CL_BLOCK_BUDGET = 4 * 1024 * 1024    # budget (bytes) for an (L, TC) channel-tiled block


def _window_sum(x, kernel_size, pad, axis, step):
    """Stride-1 zero-padded moving-window sum of 2D f32 `x` along `axis`.

    result[i] = sum_k x[i + (k - pad) * step], out-of-range taps contribute 0.
    Shifts use pltpu.roll (XLU) so the adds stay pure VALU work; wrapped
    elements are masked via an iota compare.
    """
    n = x.shape[axis]
    pos = jax.lax.broadcasted_iota(jnp.int32, x.shape, axis)
    acc = None
    for k in range(kernel_size):
        off = (k - pad) * step                      # static python int
        if off == 0:
            term = x
        else:
            shifted = pltpu.roll(x, (-off) % n, axis)   # shifted[i] = x[(i+off) % n]
            valid = (pos + off >= 0) & (pos + off < n)
            term = jnp.where(valid, shifted, 0.0)
        acc = term if acc is None else acc + term
    return acc


def _mavg_kernel_flat(x_ref, o_ref, *, kernel_size, pad, channels):
    # x_ref: (TB, L*C)   -- sequence folded onto the lane axis; 1 time step == C lanes
    # o_ref: (TB, L_s1*C)
    x = x_ref[...].astype(jnp.float32)
    s = _window_sum(x, kernel_size, pad, axis=1, step=channels)
    o_ref[...] = (s[:, : o_ref.shape[1]] * (1.0 / kernel_size)).astype(o_ref.dtype)


def _mavg_kernel_cl(x_ref, o_ref, *, kernel_size, pad):
    # x_ref: (1, L, TC)  -- one batch element, lane-dense channel tile
    # o_ref: (1, L_s1, TC)
    x = x_ref[0, :, :].astype(jnp.float32)
    s = _window_sum(x, kernel_size, pad, axis=0, step=1)
    o_ref[0, :, :] = (s[: o_ref.shape[1], :] * (1.0 / kernel_size)).astype(o_ref.dtype)


def moving_avg(x, kernel_size, stride):
    """Equivalent of moving_avg(kernel_size, stride).forward(x) for x:(B, L, C)."""
    B, L, C = x.shape
    pad = (kernel_size - 1) // 2
    l_out = (L + 2 * pad - kernel_size) // stride + 1
    l_s1 = L + 2 * pad - kernel_size + 1            # number of stride-1 output positions
    itemsize = x.dtype.itemsize

    use_flat = (C < 128) and (L * C * itemsize <= _FLAT_BLOCK_BUDGET)

    if use_flat:
        # Fold (L, C) onto the lane axis (metadata-only reshape) -> lane-dense even for tiny C.
        xf = x.reshape(B, L * C)
        row_bytes = (L * C + l_s1 * C) * itemsize * 2     # double-buffered in + out per row
        if B <= 8:
            tb = B                                         # single grid step for tiny shapes
        else:
            tb = max(8, min(B, (_FLAT_BLOCK_BUDGET // max(row_bytes, 1)) // 8 * 8))
        out_flat = pl.pallas_call(
            partial(_mavg_kernel_flat, kernel_size=kernel_size, pad=pad, channels=C),
            out_shape=jax.ShapeDtypeStruct((B, l_s1 * C), x.dtype),
            grid=(pl.cdiv(B, tb),),
            in_specs=[pl.BlockSpec((tb, L * C), lambda b: (b, 0))],
            out_specs=pl.BlockSpec((tb, l_s1 * C), lambda b: (b, 0)),
            compiler_params=pltpu.CompilerParams(
                dimension_semantics=("parallel",),
                vmem_limit_bytes=_VMEM_LIMIT),
        )(xf)
        out_s1 = out_flat.reshape(B, l_s1, C)
    else:
        # Channel-tiled layout: lane-dense TC tiles (multiple of 128 when possible).
        tc = C
        for cand in (512, 256, 128):
            if C % cand == 0 and L * cand * itemsize <= _CL_BLOCK_BUDGET:
                tc = cand
                break
        else:
            if C % 128 == 0:
                # TODO(synk): tile L with a (kernel_size-1) halo for very long sequences.
                tc = 128
        out_s1 = pl.pallas_call(
            partial(_mavg_kernel_cl, kernel_size=kernel_size, pad=pad),
            out_shape=jax.ShapeDtypeStruct((B, l_s1, C), x.dtype),
            grid=(B, C // tc),
            in_specs=[pl.BlockSpec((1, L, tc), lambda b, c: (b, 0, c))],
            out_specs=pl.BlockSpec((1, l_s1, tc), lambda b, c: (b, 0, c)),
            compiler_params=pltpu.CompilerParams(
                dimension_semantics=("parallel", "parallel"),
                vmem_limit_bytes=_VMEM_LIMIT),
        )(x)

    if stride == 1:
        return out_s1
    # TODO(synk): fold the stride subsampling into the kernel (strided output store).
    return out_s1[:, ::stride, :][:, :l_out, :]


def _reference_moving_avg(x, kernel_size, stride):
    # Pure-JAX mirror of torch.nn.AvgPool1d(kernel, stride, padding=(kernel-1)//2,
    # count_include_pad=True) applied over the L axis of (B, L, C).
    B, L, C = x.shape
    pad = (kernel_size - 1) // 2
    l_out = (L + 2 * pad - kernel_size) // stride + 1
    xp = jnp.pad(x, ((0, 0), (pad, pad), (0, 0)))
    windows = jnp.stack(
        [xp[:, k : k + (l_out - 1) * stride + 1 : stride, :] for k in range(kernel_size)],
        axis=0,
    )
    return jnp.mean(windows.astype(jnp.float32), axis=0).astype(x.dtype)


if __name__ == "__main__":
    key = jax.random.PRNGKey(0)

    # Case 1: module-typical shape/params (small C -> flattened lane-dense path).
    B, L, C = 2, 16, 8
    x = jax.random.normal(key, (B, L, C), dtype=jnp.float32)
    out = jax.block_until_ready(moving_avg(x, 5, 1))
    ref = _reference_moving_avg(x, 5, 1)
    assert out.shape == ref.shape, (out.shape, ref.shape)
    assert jnp.allclose(out, ref, atol=1e-5, rtol=1e-5), "mismatch (k=5, stride=1)"

    # Case 2: even kernel + stride>1 (exercises the stride path).
    out2 = jax.block_until_ready(moving_avg(x, 4, 2))
    ref2 = _reference_moving_avg(x, 4, 2)
    assert out2.shape == ref2.shape, (out2.shape, ref2.shape)
    assert jnp.allclose(out2, ref2, atol=1e-5, rtol=1e-5), "mismatch (k=4, stride=2)"

    # Case 3: large C (channel-tiled lane-dense path, sublane rolls).
    x3 = jax.random.normal(jax.random.PRNGKey(1), (2, 32, 256), dtype=jnp.float32)
    out3 = jax.block_until_ready(moving_avg(x3, 7, 1))
    ref3 = _reference_moving_avg(x3, 7, 1)
    assert out3.shape == ref3.shape, (out3.shape, ref3.shape)
    assert jnp.allclose(out3, ref3, atol=1e-5, rtol=1e-5), "mismatch (k=7, stride=1, C=256)"

    print("KERNEL_OK")
</pallas_src>

<mosaic_0001>
module attributes {stable_mosaic.version = 11 : i64} {
  func.func @_mavg_kernel_flat(%arg0: i32, %arg1: memref<2x128xf32, #tpu.memory_space<vmem>>, %arg2: memref<2x128xf32, #tpu.memory_space<vmem>>) attributes {dimension_semantics = [#tpu.dimension_semantics<parallel>], iteration_bounds = array<i64: 1>, scalar_prefetch = 0 : i64, scratch_operands = 0 : i64, tpu.core_type = #tpu.core_type<tc>, window_params = [{transform_indices = @transform_0, window_bounds = array<i64: 2, 128>}, {transform_indices = @transform_1, window_bounds = array<i64: 2, 128>}]} {
    %c0 = arith.constant 0 : index
    %c0_0 = arith.constant 0 : index
    %0 = vector.load %arg1[%c0, %c0_0] : memref<2x128xf32, #tpu.memory_space<vmem>>, vector<2x128xf32>
    %1 = tpu.iota {dimensions = array<i32: 1>} : vector<2x128xi32>
    %c16_i32 = arith.constant 16 : i32
    %2 = tpu.dynamic_rotate %0 by %c16_i32 dim 1 : vector<2x128xf32>, i32 -> vector<2x128xf32>
    %c-16_i32 = arith.constant -16 : i32
    %3 = vector.broadcast %c-16_i32 : i32 to vector<2x128xi32>
    %4 = arith.addi %1, %3 : vector<2x128xi32>
    %c0_i32 = arith.constant 0 : i32
    %5 = vector.broadcast %c0_i32 : i32 to vector<2x128xi32>
    %6 = arith.cmpi sge, %4, %5 : vector<2x128xi32>
    %c-16_i32_1 = arith.constant -16 : i32
    %7 = vector.broadcast %c-16_i32_1 : i32 to vector<2x128xi32>
    %8 = arith.addi %1, %7 : vector<2x128xi32>
    %c128_i32 = arith.constant 128 : i32
    %9 = vector.broadcast %c128_i32 : i32 to vector<2x128xi32>
    %10 = arith.cmpi slt, %8, %9 : vector<2x128xi32>
    %11 = arith.andi %6, %10 : vector<2x128xi1>
    %cst = arith.constant 0.000000e+00 : f32
    %12 = vector.broadcast %cst : f32 to vector<2x128xf32>
    %13 = arith.select %11, %2, %12 : vector<2x128xi1>, vector<2x128xf32>
    %c8_i32 = arith.constant 8 : i32
    %14 = tpu.dynamic_rotate %0 by %c8_i32 dim 1 : vector<2x128xf32>, i32 -> vector<2x128xf32>
    %c-8_i32 = arith.constant -8 : i32
    %15 = vector.broadcast %c-8_i32 : i32 to vector<2x128xi32>
    %16 = arith.addi %1, %15 : vector<2x128xi32>
    %c0_i32_2 = arith.constant 0 : i32
    %17 = vector.broadcast %c0_i32_2 : i32 to vector<2x128xi32>
    %18 = arith.cmpi sge, %16, %17 : vector<2x128xi32>
    %c-8_i32_3 = arith.constant -8 : i32
    %19 = vector.broadcast %c-8_i32_3 : i32 to vector<2x128xi32>
    %20 = arith.addi %1, %19 : vector<2x128xi32>
    %c128_i32_4 = arith.constant 128 : i32
    %21 = vector.broadcast %c128_i32_4 : i32 to vector<2x128xi32>
    %22 = arith.cmpi slt, %20, %21 : vector<2x128xi32>
    %23 = arith.andi %18, %22 : vector<2x128xi1>
    %cst_5 = arith.constant 0.000000e+00 : f32
    %24 = vector.broadcast %cst_5 : f32 to vector<2x128xf32>
    %25 = arith.select %23, %14, %24 : vector<2x128xi1>, vector<2x128xf32>
    %26 = arith.addf %13, %25 : vector<2x128xf32>
    %27 = arith.addf %26, %0 : vector<2x128xf32>
    %c120_i32 = arith.constant 120 : i32
    %28 = tpu.dynamic_rotate %0 by %c120_i32 dim 1 : vector<2x128xf32>, i32 -> vector<2x128xf32>
    %c8_i32_6 = arith.constant 8 : i32
    %29 = vector.broadcast %c8_i32_6 : i32 to vector<2x128xi32>
    %30 = arith.addi %1, %29 : vector<2x128xi32>
    %c0_i32_7 = arith.constant 0 : i32
    %31 = vector.broadcast %c0_i32_7 : i32 to vector<2x128xi32>
    %32 = arith.cmpi sge, %30, %31 : vector<2x128xi32>
    %c8_i32_8 = arith.constant 8 : i32
    %33 = vector.broadcast %c8_i32_8 : i32 to vector<2x128xi32>
    %34 = arith.addi %1, %33 : vector<2x128xi32>
    %c128_i32_9 = arith.constant 128 : i32
    %35 = vector.broadcast %c128_i32_9 : i32 to vector<2x128xi32>
    %36 = arith.cmpi slt, %34, %35 : vector<2x128xi32>
    %37 = arith.andi %32, %36 : vector<2x128xi1>
    %cst_10 = arith.constant 0.000000e+00 : f32
    %38 = vector.broadcast %cst_10 : f32 to vector<2x128xf32>
    %39 = arith.select %37, %28, %38 : vector<2x128xi1>, vector<2x128xf32>
    %40 = arith.addf %27, %39 : vector<2x128xf32>
    %c112_i32 = arith.constant 112 : i32
    %41 = tpu.dynamic_rotate %0 by %c112_i32 dim 1 : vector<2x128xf32>, i32 -> vector<2x128xf32>
    %c16_i32_11 = arith.constant 16 : i32
    %42 = vector.broadcast %c16_i32_11 : i32 to vector<2x128xi32>
    %43 = arith.addi %1, %42 : vector<2x128xi32>
    %c0_i32_12 = arith.constant 0 : i32
    %44 = vector.broadcast %c0_i32_12 : i32 to vector<2x128xi32>
    %45 = arith.cmpi sge, %43, %44 : vector<2x128xi32>
    %c16_i32_13 = arith.constant 16 : i32
    %46 = vector.broadcast %c16_i32_13 : i32 to vector<2x128xi32>
    %47 = arith.addi %1, %46 : vector<2x128xi32>
    %c128_i32_14 = arith.constant 128 : i32
    %48 = vector.broadcast %c128_i32_14 : i32 to vector<2x128xi32>
    %49 = arith.cmpi slt, %47, %48 : vector<2x128xi32>
    %50 = arith.andi %45, %49 : vector<2x128xi1>
    %cst_15 = arith.constant 0.000000e+00 : f32
    %51 = vector.broadcast %cst_15 : f32 to vector<2x128xf32>
    %52 = arith.select %50, %41, %51 : vector<2x128xi1>, vector<2x128xf32>
    %53 = arith.addf %40, %52 : vector<2x128xf32>
    %cst_16 = arith.constant 2.000000e-01 : f32
    %54 = vector.broadcast %cst_16 : f32 to vector<2x128xf32>
    %55 = arith.mulf %53, %54 : vector<2x128xf32>
    %c0_17 = arith.constant 0 : index
    %c0_18 = arith.constant 0 : index
    %56 = vector.load %arg2[%c0_17, %c0_18] : memref<2x128xf32, #tpu.memory_space<vmem>>, vector<2x128xf32>
    tpu.vector_store %arg2[%c0_17, %c0_18], %55 {strides = array<i32>} : memref<2x128xf32, #tpu.memory_space<vmem>>, vector<2x128xf32>,
    return
  }
  func.func @transform_0(%arg0: i32) -> (i32, i32) {
    %c0_i32 = arith.constant 0 : i32
    %c0_i32_0 = arith.constant 0 : i32
    return %arg0, %c0_i32 : i32, i32
  }
  func.func @transform_1(%arg0: i32) -> (i32, i32) {
    %c0_i32 = arith.constant 0 : i32
    %c0_i32_0 = arith.constant 0 : i32
    return %arg0, %c0_i32 : i32, i32
  }
}

</mosaic_0001>

<llo_original>
// kernel: tpu_custom_call.1
$region0: #{tpu_custom_call.1}
  #allocation0 [shape = 'u32[]', space=smem, size = 0x4, offset = 0x4, fixed_abs, tag = 'smem constant byte address 0x4 - core index']
  #allocation1 [shape = 'u32[144,128]{1,0:T(1,128)}', space=vmem, size = 0x12000, scoped, tag = 'internal scratch']
  %s0 = inlined_call_operand.hbm [shape: f32[2,128], index: 0, kind: input, shape index: {}]
  %s1 = inlined_call_operand.hbm [shape: f32[2,128], index: 1, kind: output, shape index: {}]
  %s2 = sld [smem:[#allocation0]]
  $region18: #{tpu_custom_call.1} parent=0
    _
  %s4 = ssub.s32 1, %s2
  %s5 = scalar_select 0, %s4, %s2
  $region1: #{tpu_custom_call.1} parent=0
    #allocation2 [shape = 'u8[1024]{0}', space=vmem, size = 0x400, scoped, tag = 'input window, operand 0, single buffered']
    #allocation3 [shape = 's32[1]{0}', space=sflag, size = 0x4, scoped, tag = 'scoped memory for tpu_custom_call.1']
    #allocation4 [shape = 's32[1]{0}', space=sflag, size = 0x4, scoped, tag = 'scoped memory for tpu_custom_call.1']
    #allocation5 [shape = 'u8[1024]{0}', space=vmem, size = 0x400, scoped, tag = 'output window, operand 0, single buffered']
    %6 = vsyncpa [#allocation3], 0
    %7 = vsyncpa [#allocation4], 0
    // Predicated region
    $region2: #{tpu_custom_call.1} parent=1 // pred_check
      _
    $region3: #{tpu_custom_call.1} parent=1 // pred_check_branch
      %9 = sbr.rel (0) target = $region5
    $region4: #{tpu_custom_call.1} parent=1 // pred_region
      %s11 = ssub.s32 32, 32
      %12 = vsyncadd [#allocation3], %s11
      %s14 = sshll.u32 [#allocation2], 4
      %s15 = int_to_ptr.vmem [resolvable:$true] %s14
      %17 = dma.hbm_to_vmem [thread:$0]  %s0, 32, %s15, [#allocation3]
    $region5: #{tpu_custom_call.1} parent=1 // pred_fallthru
      _
    // Predicated region
    $region6: #{tpu_custom_call.1} parent=1 // pred_check
      _
    $region7: #{tpu_custom_call.1} parent=1 // pred_check_branch
      %19 = sbr.rel (0) target = $region9
    $region8: #{tpu_custom_call.1} parent=1 // pred_region
      %20 = dma.done [#allocation3], 32
    $region9: #{tpu_custom_call.1} parent=1 // pred_fallthru
      _
    %v21 = vld [vmem:[#allocation2] sm:$0x3]
    %v22 = vlaneseq
    %v23 = vand.u32 %v22, 127
    %24 = vrot.lane.b32.xlu0 %v21, 16
    %v25 = vpop.permute.xlu0 %24
    %v26 = vadd.s32 %v23, 4294967280
    %vm27 = vcmp.ge.s32.totalorder %v26, 0
    %vm28 = vcmp.lt.s32.totalorder %v26, 128
    %vm29 = vmand %vm27, %vm28
    %v30 = vsel %vm29, %v25, 0.0
    %31 = vrot.lane.b32.xlu0 %v21, 8
    %v32 = vpop.permute.xlu0 %31
    %v33 = vadd.s32 %v23, 4294967288
    %vm34 = vcmp.ge.s32.totalorder %v33, 0
    %vm35 = vcmp.lt.s32.totalorder %v33, 128
    %vm36 = vmand %vm34, %vm35
    %v37 = vsel %vm36, %v32, 0.0
    %v38 = vadd.f32 %v30, %v37
    %v39 = vadd.f32 %v38, %v21
    %40 = vrot.lane.b32.xlu0 %v21, 120
    %v41 = vpop.permute.xlu0 %40
    %v42 = vadd.s32 %v23, 8
    %vm43 = vcmp.ge.s32.totalorder %v42, 0
    %vm44 = vcmp.lt.s32.totalorder %v42, 128
    %vm45 = vmand %vm43, %vm44
    %v46 = vsel %vm45, %v41, 0.0
    %v47 = vadd.f32 %v39, %v46
    %48 = vrot.lane.b32.xlu0 %v21, 112
    %v49 = vpop.permute.xlu0 %48
    %v50 = vadd.s32 %v23, 16
    %vm51 = vcmp.ge.s32.totalorder %v50, 0
    %vm52 = vcmp.lt.s32.totalorder %v50, 128
    %vm53 = vmand %vm51, %vm52
    %v54 = vsel %vm53, %v49, 0.0
    %v55 = vadd.f32 %v47, %v54
    %v56 = vmul.f32 %v55, 0.2
    %57 = vst [vmem:[#allocation5] sm:$0x3] %v56
    // Predicated region
    $region10: #{tpu_custom_call.1} parent=1 // pred_check
      _
    $region11: #{tpu_custom_call.1} parent=1 // pred_check_branch
      %59 = sbr.rel (0) target = $region13
    $region12: #{tpu_custom_call.1} parent=1 // pred_region
      %s61 = ssub.s32 32, 32
      %62 = vsyncadd [#allocation4], %s61
      %s64 = sshll.u32 [#allocation5], 4
      %s65 = int_to_ptr.vmem [resolvable:$true] %s64
      %67 = dma.vmem_to_hbm [thread:$0]  %s65, 32, %s1, [#allocation4]
    $region13: #{tpu_custom_call.1} parent=1 // pred_fallthru
      _
    // Predicated region
    $region14: #{tpu_custom_call.1} parent=1 // pred_check
      _
    $region15: #{tpu_custom_call.1} parent=1 // pred_check_branch
      %69 = sbr.rel (0) target = $region17
    $region16: #{tpu_custom_call.1} parent=1 // pred_region
      %70 = dma.done [#allocation4], 32
    $region17: #{tpu_custom_call.1} parent=1 // pred_fallthru
      _
    %71 = vsyncpa [#allocation3], 1
    %72 = vsyncpa [#allocation4], 1

</llo_original>
